<compile_context>
chip_gen: v7x
topology: tpu7x:2x2x1
jax: 0.10.0
libtpu: 0.0.40
codegen_flags: <defaults>
</compile_context>

<pallas_src>
import functools

import jax
import jax.numpy as jnp
import numpy as np
from jax import lax
from jax.experimental import pallas as pl
from jax.experimental.pallas import tpu as pltpu

R_SIZE = 5        # self.r_matrix_size in the PyTorch module
TILE_LANES = 128  # lane-tile width; each grid step owns one 128-lane tile of nodes


def _round_up(x, m):
    return (x + m - 1) // m * m


def _weight_rows(H, O):
    """Row offsets of the packed weight buffer (all 8-aligned)."""
    rt = 2 * H + O                         # rows for [Wr1;Wr2;Wr3] and K*[b1;b2;b3]
    row_w1 = _round_up(rt, 8)
    row_w2 = row_w1 + _round_up(H, 8)
    row_w3 = row_w2 + _round_up(H, 8)
    rows_total = row_w3 + _round_up(O, 8)
    return row_w1, row_w2, row_w3, rows_total


def _mlp_kernel(x_ref, struct_ref, w_ref, out_ref, *, H, O, C, K):
    """One 128-lane tile of nodes (whole graphs only).  Feature-major layout:
    nodes stay on the LANE axis for every operand, matmul output, reduction and
    the final store."""
    adjT = struct_ref[0]        # (TL, TL) neighbor-count matrix (block-diag per graph)
    same = struct_ref[1]        # (TL, TL) same-graph indicator (block-diag ones)
    x = x_ref[...]              # (R_SIZE + C, TL): rows 0..4 = sum_k r, rows 5.. = p
    w = w_ref[...]              # packed weights, see _pack_weights()

    rt = 2 * H + O
    row_w1, row_w2, row_w3, _ = _weight_rows(H, O)

    # Fused r-projection of all three layers (+ K-scaled biases).  Contraction
    # depth is only 5 -> 5 VPU broadcast-FMAs instead of an MXU dot.
    rproj = w[0:rt, R_SIZE:R_SIZE + 1] + w[0:rt, 0:1] * x[0:1, :]
    for j in range(1, R_SIZE):
        rproj = rproj + w[0:rt, j:j + 1] * x[j:j + 1, :]           # (rt, TL)

    kf = float(K)

    def agg(f):
        # sum_k (f[n] - f[neigh[n,k]])  ==  K*f - f @ AdjT   (nodes on lanes)
        return kf * f - jnp.dot(f, adjT, preferred_element_type=jnp.float32)

    # ---- layer 1 ------------------------------------------------------------
    a = agg(x[R_SIZE:R_SIZE + C, :])                               # (C, TL)
    if C == 1:
        # contraction depth 1 -> VPU outer product, skip the MXU
        d1 = w[row_w1:row_w1 + H, 0:1] * a                         # (H,1)*(1,TL)
    else:
        d1 = jnp.dot(w[row_w1:row_w1 + H, 0:C], a,
                     preferred_element_type=jnp.float32)
    f = jnp.maximum(rproj[0:H, :] + d1, 0.0)                       # (H, TL)

    # ---- layer 2 ------------------------------------------------------------
    f = jnp.maximum(
        rproj[H:2 * H, :]
        + jnp.dot(w[row_w2:row_w2 + H, 0:H], agg(f),
                  preferred_element_type=jnp.float32), 0.0)

    # ---- layer 3 + per-graph softmax over nodes (lane axis) -----------------
    logits = (rproj[2 * H:rt, :]
              + jnp.dot(w[row_w3:row_w3 + O, 0:H], agg(f),
                        preferred_element_type=jnp.float32))       # (O, TL)

    lane_valid = jnp.sum(same, axis=0, keepdims=True) > 0.5        # (1, TL)
    logits = jnp.where(lane_valid, logits, -1e30)                  # mask padded lanes
    # A single tile-wide shift is exact for every per-graph softmax (the shift
    # cancels between numerator and denominator); `same` restricts each
    # denominator to the lanes of its own graph only.
    shift = jnp.max(logits, axis=-1, keepdims=True)                # (O, 1)
    e = jnp.exp(logits - shift)
    denom = jnp.dot(e, same, preferred_element_type=jnp.float32)   # per-lane graph sums
    inv = pl.reciprocal(jnp.where(lane_valid, denom, 1.0), approx=False)
    out_ref[...] = jnp.where(lane_valid, e * inv, 0.0)


def build_structure(indices_neigh_tri, num_nodes, tile_lanes=TILE_LANES):
    """Per-topology constants -- build once per mesh/batch layout and cache.

    Packs G graphs of `num_nodes` nodes onto 128-lane tiles (whole graphs per
    tile, remaining lanes padded) and builds, block-diagonally per graph:
      adjT[m, n] = #{k : neigh[n, k] == m}     (neighbor-count operator)
      same[m, n] = 1 iff lanes m, n belong to the same (real) graph
    Entries are tiny integers/indicators; kept f32 so the in-kernel
    contractions stay exact at the 1e-5 tolerance.
    """
    G = indices_neigh_tri.shape[0]
    N = num_nodes
    assert N <= tile_lanes, "each graph must fit inside one lane tile"
    neigh = indices_neigh_tri[:, :, 1:].astype(jnp.int32)          # (G, N, K)
    gpt = tile_lanes // N                                          # graphs per tile
    num_tiles = -(-G // gpt)
    L = num_tiles * tile_lanes

    g = jnp.arange(G, dtype=jnp.int32)
    offs = (g // gpt) * tile_lanes + (g % gpt) * N                 # lane offset per graph
    node_ids = jnp.arange(N, dtype=jnp.int32)
    node_lanes = (offs[:, None] + node_ids[None, :]).reshape(-1)   # (G*N,)

    rows = (offs[:, None, None] + neigh).reshape(-1)
    cols = (offs[:, None, None]
            + jnp.broadcast_to(node_ids[None, :, None], neigh.shape)).reshape(-1)
    adjT = jnp.zeros((L, L), jnp.float32).at[rows, cols].add(1.0)

    gid = jnp.full((L,), -1, jnp.int32).at[node_lanes].set(jnp.repeat(g, N))
    same = ((gid[:, None] == gid[None, :]) & (gid[:, None] >= 0)).astype(jnp.float32)

    struct = jnp.stack([adjT, same], axis=0)                       # (2, L, L)
    return dict(struct=struct, node_lanes=node_lanes, num_graphs=G, num_nodes=N,
                num_tiles=num_tiles, tile_lanes=tile_lanes, lanes=L)


def _pack_weights(params, K):
    """All shape-static weights in one padded f32 buffer (single DMA)."""
    W1, b1 = params["W1"], params["b1"]
    W2, b2 = params["W2"], params["b2"]
    W3, b3 = params["W3"], params["b3"]
    H, O = W1.shape[0], W3.shape[0]
    C = W1.shape[1] - R_SIZE
    row_w1, row_w2, row_w3, rows_total = _weight_rows(H, O)
    cols_total = max(R_SIZE + 1, H, C)

    wr_all = jnp.concatenate([W1[:, :R_SIZE], W2[:, :R_SIZE], W3[:, :R_SIZE]], axis=0)
    b_all = jnp.concatenate([b1, b2, b3]) * K      # bias summed K times, matches torch

    w = jnp.zeros((rows_total, cols_total), jnp.float32)
    w = w.at[0:2 * H + O, 0:R_SIZE].set(wr_all.astype(jnp.float32))
    w = w.at[0:2 * H + O, R_SIZE].set(b_all.astype(jnp.float32))
    w = w.at[row_w1:row_w1 + H, 0:C].set(W1[:, R_SIZE:].astype(jnp.float32))
    w = w.at[row_w2:row_w2 + H, 0:H].set(W2[:, R_SIZE:].astype(jnp.float32))
    w = w.at[row_w3:row_w3 + O, 0:H].set(W3[:, R_SIZE:].astype(jnp.float32))
    return w, H, O, C


def _vmem_limit_bytes(tile_lanes, rows_total, cols_total, H, O, C):
    """Generation-aware VMEM budget (cap at ~0.75x physical capacity)."""
    blk = (2 * tile_lanes * tile_lanes             # struct diag block
           + (R_SIZE + C) * tile_lanes             # packed node features
           + rows_total * cols_total               # packed weights
           + O * tile_lanes) * 4                   # output tile
    act = (8 * H + 4 * O) * tile_lanes * 4         # generous bound on live f32 temps
    est = 2 * blk + act + (1 << 20)                # x2: double-buffered pipeline
    try:
        cap = int(pltpu.get_tpu_info().vmem_capacity_bytes)
    except Exception:                              # conservative fallback (v7x: 64 MiB)
        cap = 64 * 2 ** 20
    return int(min(int(0.75 * cap), max(est, 32 * 2 ** 20)))


def mlp_forward_batched(p_init, r_matrix, indices_neigh_tri, params, structure=None):
    """p_init (G, N), r_matrix (G, N, K, 5), indices_neigh_tri (G, N, K+1) int."""
    G, N = p_init.shape
    K = indices_neigh_tri.shape[-1] - 1
    if structure is None:
        structure = build_structure(indices_neigh_tri, N)
    TL = structure["tile_lanes"]
    L = structure["lanes"]
    num_tiles = structure["num_tiles"]
    node_lanes = structure["node_lanes"]

    w_pack, H, O, C = _pack_weights(params, K)
    assert C == 1, "module forward implies scalar node features (input_channels == 1)"
    _, _, _, rows_total = _weight_rows(H, O)
    cols_total = w_pack.shape[1]

    # Node-feature operand, nodes on the lane axis (rows 0..4: sum_k r, row 5: p).
    rsum = r_matrix.sum(axis=2)                                    # (G, N, 5)
    vals = jnp.concatenate([rsum, p_init[..., None]], axis=-1)     # (G, N, 6)
    x_pack = (jnp.zeros((L, R_SIZE + C), jnp.float32)
              .at[node_lanes].set(vals.reshape(G * N, R_SIZE + C).astype(jnp.float32))).T

    vmem_limit = _vmem_limit_bytes(TL, rows_total, cols_total, H, O, C)

    out = pl.pallas_call(
        functools.partial(_mlp_kernel, H=H, O=O, C=C, K=K),
        out_shape=jax.ShapeDtypeStruct((O, L), jnp.float32),       # lane-dense output
        grid=(num_tiles,),
        in_specs=[
            pl.BlockSpec((R_SIZE + C, TL), lambda t: (0, t)),
            pl.BlockSpec((2, TL, TL), lambda t: (0, t, t)),        # diagonal blocks only
            pl.BlockSpec((rows_total, cols_total), lambda t: (0, 0)),
        ],
        out_specs=pl.BlockSpec((O, TL), lambda t: (0, t)),
        compiler_params=pltpu.CompilerParams(
            dimension_semantics=("parallel",),                     # v7x: shard tiles on 2 TCs
            vmem_limit_bytes=vmem_limit),
    )(x_pack, structure["struct"], w_pack)

    per_node = out[:, node_lanes].reshape(O, G, N).transpose(1, 2, 0)    # (G, N, O)
    # Match torch's `.squeeze()` after softmax(dim=0) for the usual O == 1 case.
    return per_node[..., 0] if O == 1 else per_node


def mlp_forward(p_init, r_matrix, indices_neigh_tri, params):
    """Single-graph forward with the PyTorch-module signature/semantics."""
    return mlp_forward_batched(p_init[None], r_matrix[None],
                               indices_neigh_tri[None], params)[0]


def _reference(p_init, r_matrix, indices, params):
    """Literal pure-JAX transcription of the PyTorch forward (single graph)."""
    neigh = indices[:, 1:]
    hi = lax.Precision.HIGHEST   # keep the reference itself at full f32 accuracy

    def lin(x, W, b):
        return jnp.einsum("nkc,hc->nkh", x, W, precision=hi) + b

    f = p_init[:, None]                                            # (N, 1)
    d = f[:, None, :] - f[neigh]
    f = jax.nn.relu(lin(jnp.concatenate([r_matrix, d], 2), params["W1"], params["b1"]).sum(1))
    d = f[:, None, :] - f[neigh]
    f = jax.nn.relu(lin(jnp.concatenate([r_matrix, d], 2), params["W2"], params["b2"]).sum(1))
    d = f[:, None, :] - f[neigh]
    out = lin(jnp.concatenate([r_matrix, d], 2), params["W3"], params["b3"]).sum(1)
    return jax.nn.softmax(jnp.squeeze(out), axis=0)


if __name__ == "__main__":
    key = jax.random.PRNGKey(0)
    # 24 graphs x 8 nodes -> 2 lane tiles of 128 (tile 1 is partly padded, which
    # exercises the padded-lane masking path) and a 2-step parallel grid.
    G, N, K = 24, 8, 3
    input_channels, hidden_channels, output_channels = 1, 32, 1

    k1, k2, k3, k4, k5, k6, k7, k8, k9 = jax.random.split(key, 9)
    p_init = jax.random.normal(k1, (G, N), jnp.float32)
    r_matrix = jax.random.normal(k2, (G, N, K, R_SIZE), jnp.float32)
    indices_neigh_tri = jax.random.randint(k3, (G, N, K + 1), 0, N, dtype=jnp.int32)

    def linear_init(kw, kb, out_f, in_f):
        bound = 1.0 / np.sqrt(in_f)
        W = jax.random.uniform(kw, (out_f, in_f), jnp.float32, -bound, bound)
        b = jax.random.uniform(kb, (out_f,), jnp.float32, -bound, bound)
        return W, b

    W1, b1 = linear_init(k4, k5, hidden_channels, input_channels + R_SIZE)
    W2, b2 = linear_init(k6, k7, hidden_channels, hidden_channels + R_SIZE)
    W3, b3 = linear_init(k8, k9, output_channels, hidden_channels + R_SIZE)
    params = dict(W1=W1, b1=b1, W2=W2, b2=b2, W3=W3, b3=b3)

    structure = build_structure(indices_neigh_tri, N)   # cache once per mesh/batch layout
    jax.block_until_ready(structure["struct"])

    out = jax.block_until_ready(
        mlp_forward_batched(p_init, r_matrix, indices_neigh_tri, params, structure))
    ref = jax.block_until_ready(
        jax.vmap(_reference, in_axes=(0, 0, 0, None))(p_init, r_matrix,
                                                      indices_neigh_tri, params))

    assert out.shape == ref.shape, (out.shape, ref.shape)
    assert np.allclose(np.asarray(out), np.asarray(ref), rtol=1e-5, atol=1e-5), \
        float(np.abs(np.asarray(out) - np.asarray(ref)).max())
    print("KERNEL_OK")
</pallas_src>

<mosaic_0001>
module attributes {stable_mosaic.version = 11 : i64} {
  func.func @_mlp_kernel(%arg0: i32, %arg1: memref<6x128xf32, #tpu.memory_space<vmem>>, %arg2: memref<2x128x128xf32, #tpu.memory_space<vmem>>, %arg3: memref<144x32xf32, #tpu.memory_space<vmem>>, %arg4: memref<1x128xf32, #tpu.memory_space<vmem>>) attributes {dimension_semantics = [#tpu.dimension_semantics<parallel>], iteration_bounds = array<i64: 2>, scalar_prefetch = 0 : i64, scratch_operands = 0 : i64, tpu.core_type = #tpu.core_type<tc>, window_params = [{transform_indices = @transform_0, window_bounds = array<i64: 6, 128>}, {transform_indices = @transform_1, window_bounds = array<i64: 2, 128, 128>}, {pipeline_mode = #tpu.pipeline_mode<synchronous>, transform_indices = @transform_2, window_bounds = array<i64: 144, 32>}, {transform_indices = @transform_3, window_bounds = array<i64: 1, 128>}]} {
    %c0 = arith.constant 0 : index
    %c0_0 = arith.constant 0 : index
    %c0_1 = arith.constant 0 : index
    %0 = vector.load %arg2[%c0, %c0_0, %c0_1] : memref<2x128x128xf32, #tpu.memory_space<vmem>>, vector<1x128x128xf32>
    %1 = vector.shape_cast %0 : vector<1x128x128xf32> to vector<128x128xf32>
    %c1 = arith.constant 1 : index
    %c0_2 = arith.constant 0 : index
    %c0_3 = arith.constant 0 : index
    %2 = vector.load %arg2[%c1, %c0_2, %c0_3] : memref<2x128x128xf32, #tpu.memory_space<vmem>>, vector<1x128x128xf32>
    %3 = vector.shape_cast %2 : vector<1x128x128xf32> to vector<128x128xf32>
    %c0_4 = arith.constant 0 : index
    %c0_5 = arith.constant 0 : index
    %4 = vector.load %arg1[%c0_4, %c0_5] : memref<6x128xf32, #tpu.memory_space<vmem>>, vector<6x128xf32>
    %c0_6 = arith.constant 0 : index
    %c0_7 = arith.constant 0 : index
    %5 = vector.load %arg3[%c0_6, %c0_7] : memref<144x32xf32, #tpu.memory_space<vmem>>, vector<144x32xf32>
    %6 = vector.extract_strided_slice %5 {offsets = [0, 5], sizes = [65, 1], strides = [1, 1]} : vector<144x32xf32> to vector<65x1xf32>
    %7 = vector.extract_strided_slice %5 {offsets = [0, 0], sizes = [65, 1], strides = [1, 1]} : vector<144x32xf32> to vector<65x1xf32>
    %8 = vector.extract_strided_slice %4 {offsets = [0, 0], sizes = [1, 128], strides = [1, 1]} : vector<6x128xf32> to vector<1x128xf32>
    %9 = vector.broadcast %7 : vector<65x1xf32> to vector<65x128xf32>
    %10 = vector.broadcast %8 : vector<1x128xf32> to vector<65x128xf32>
    %11 = arith.mulf %9, %10 : vector<65x128xf32>
    %12 = vector.broadcast %6 : vector<65x1xf32> to vector<65x128xf32>
    %13 = arith.addf %12, %11 : vector<65x128xf32>
    %14 = vector.extract_strided_slice %5 {offsets = [0, 1], sizes = [65, 1], strides = [1, 1]} : vector<144x32xf32> to vector<65x1xf32>
    %15 = vector.extract_strided_slice %4 {offsets = [1, 0], sizes = [1, 128], strides = [1, 1]} : vector<6x128xf32> to vector<1x128xf32>
    %16 = vector.broadcast %14 : vector<65x1xf32> to vector<65x128xf32>
    %17 = vector.broadcast %15 : vector<1x128xf32> to vector<65x128xf32>
    %18 = arith.mulf %16, %17 : vector<65x128xf32>
    %19 = arith.addf %13, %18 : vector<65x128xf32>
    %20 = vector.extract_strided_slice %5 {offsets = [0, 2], sizes = [65, 1], strides = [1, 1]} : vector<144x32xf32> to vector<65x1xf32>
    %21 = vector.extract_strided_slice %4 {offsets = [2, 0], sizes = [1, 128], strides = [1, 1]} : vector<6x128xf32> to vector<1x128xf32>
    %22 = vector.broadcast %20 : vector<65x1xf32> to vector<65x128xf32>
    %23 = vector.broadcast %21 : vector<1x128xf32> to vector<65x128xf32>
    %24 = arith.mulf %22, %23 : vector<65x128xf32>
    %25 = arith.addf %19, %24 : vector<65x128xf32>
    %26 = vector.extract_strided_slice %5 {offsets = [0, 3], sizes = [65, 1], strides = [1, 1]} : vector<144x32xf32> to vector<65x1xf32>
    %27 = vector.extract_strided_slice %4 {offsets = [3, 0], sizes = [1, 128], strides = [1, 1]} : vector<6x128xf32> to vector<1x128xf32>
    %28 = vector.broadcast %26 : vector<65x1xf32> to vector<65x128xf32>
    %29 = vector.broadcast %27 : vector<1x128xf32> to vector<65x128xf32>
    %30 = arith.mulf %28, %29 : vector<65x128xf32>
    %31 = arith.addf %25, %30 : vector<65x128xf32>
    %32 = vector.extract_strided_slice %5 {offsets = [0, 4], sizes = [65, 1], strides = [1, 1]} : vector<144x32xf32> to vector<65x1xf32>
    %33 = vector.extract_strided_slice %4 {offsets = [4, 0], sizes = [1, 128], strides = [1, 1]} : vector<6x128xf32> to vector<1x128xf32>
    %34 = vector.broadcast %32 : vector<65x1xf32> to vector<65x128xf32>
    %35 = vector.broadcast %33 : vector<1x128xf32> to vector<65x128xf32>
    %36 = arith.mulf %34, %35 : vector<65x128xf32>
    %37 = arith.addf %31, %36 : vector<65x128xf32>
    %38 = vector.extract_strided_slice %4 {offsets = [5, 0], sizes = [1, 128], strides = [1, 1]} : vector<6x128xf32> to vector<1x128xf32>
    %cst = arith.constant 3.000000e+00 : f32
    %39 = vector.broadcast %cst : f32 to vector<1x128xf32>
    %40 = arith.mulf %39, %38 : vector<1x128xf32>
    %cst_8 = arith.constant dense<0.000000e+00> : vector<1x128xf32>
    %41 = tpu.matmul %38, %1, %cst_8 {dimension_numbers = #tpu.dot_dimension_numbers<[1], [0], [0], [1], [0, 0, 1, 1], [], []>} : vector<1x128xf32>, vector<128x128xf32>, vector<1x128xf32> -> vector<1x128xf32>
    %42 = arith.subf %40, %41 : vector<1x128xf32>
    %43 = vector.extract_strided_slice %5 {offsets = [72, 0], sizes = [32, 1], strides = [1, 1]} : vector<144x32xf32> to vector<32x1xf32>
    %44 = vector.broadcast %43 : vector<32x1xf32> to vector<32x128xf32>
    %45 = vector.broadcast %42 : vector<1x128xf32> to vector<32x128xf32>
    %46 = arith.mulf %44, %45 : vector<32x128xf32>
    %47 = vector.extract_strided_slice %37 {offsets = [0, 0], sizes = [32, 128], strides = [1, 1]} : vector<65x128xf32> to vector<32x128xf32>
    %48 = arith.addf %47, %46 : vector<32x128xf32>
    %cst_9 = arith.constant 0.000000e+00 : f32
    %49 = vector.broadcast %cst_9 : f32 to vector<32x128xf32>
    %50 = arith.maximumf %48, %49 : vector<32x128xf32>
    %51 = vector.extract_strided_slice %37 {offsets = [32, 0], sizes = [32, 128], strides = [1, 1]} : vector<65x128xf32> to vector<32x128xf32>
    %52 = vector.extract_strided_slice %5 {offsets = [104, 0], sizes = [32, 32], strides = [1, 1]} : vector<144x32xf32> to vector<32x32xf32>
    %cst_10 = arith.constant 3.000000e+00 : f32
    %53 = vector.broadcast %cst_10 : f32 to vector<32x128xf32>
    %54 = arith.mulf %53, %50 : vector<32x128xf32>
    %cst_11 = arith.constant dense<0.000000e+00> : vector<32x128xf32>
    %55 = tpu.matmul %50, %1, %cst_11 {dimension_numbers = #tpu.dot_dimension_numbers<[1], [0], [0], [1], [0, 0, 1, 1], [], []>} : vector<32x128xf32>, vector<128x128xf32>, vector<32x128xf32> -> vector<32x128xf32>
    %56 = arith.subf %54, %55 : vector<32x128xf32>
    %cst_12 = arith.constant dense<0.000000e+00> : vector<32x128xf32>
    %57 = tpu.matmul %52, %56, %cst_12 {dimension_numbers = #tpu.dot_dimension_numbers<[1], [0], [0], [1], [0, 0, 1, 1], [], []>} : vector<32x32xf32>, vector<32x128xf32>, vector<32x128xf32> -> vector<32x128xf32>
    %58 = arith.addf %51, %57 : vector<32x128xf32>
    %cst_13 = arith.constant 0.000000e+00 : f32
    %59 = vector.broadcast %cst_13 : f32 to vector<32x128xf32>
    %60 = arith.maximumf %58, %59 : vector<32x128xf32>
    %61 = vector.extract_strided_slice %37 {offsets = [64, 0], sizes = [1, 128], strides = [1, 1]} : vector<65x128xf32> to vector<1x128xf32>
    %62 = vector.extract_strided_slice %5 {offsets = [136, 0], sizes = [1, 32], strides = [1, 1]} : vector<144x32xf32> to vector<1x32xf32>
    %cst_14 = arith.constant 3.000000e+00 : f32
    %63 = vector.broadcast %cst_14 : f32 to vector<32x128xf32>
    %64 = arith.mulf %63, %60 : vector<32x128xf32>
    %cst_15 = arith.constant dense<0.000000e+00> : vector<32x128xf32>
    %65 = tpu.matmul %60, %1, %cst_15 {dimension_numbers = #tpu.dot_dimension_numbers<[1], [0], [0], [1], [0, 0, 1, 1], [], []>} : vector<32x128xf32>, vector<128x128xf32>, vector<32x128xf32> -> vector<32x128xf32>
    %66 = arith.subf %64, %65 : vector<32x128xf32>
    %cst_16 = arith.constant dense<0.000000e+00> : vector<1x128xf32>
    %67 = tpu.matmul %62, %66, %cst_16 {dimension_numbers = #tpu.dot_dimension_numbers<[1], [0], [0], [1], [0, 0, 1, 1], [], []>} : vector<1x32xf32>, vector<32x128xf32>, vector<1x128xf32> -> vector<1x128xf32>
    %68 = arith.addf %61, %67 : vector<1x128xf32>
    %cst_17 = arith.constant dense<0.000000e+00> : vector<128xf32>
    %69 = vector.multi_reduction <add>, %3, %cst_17 [0] : vector<128x128xf32> to vector<128xf32>
    %70 = vector.shape_cast %69 : vector<128xf32> to vector<1x128xf32>
    %cst_18 = arith.constant 5.000000e-01 : f32
    %71 = vector.broadcast %cst_18 : f32 to vector<1x128xf32>
    %72 = arith.cmpf ogt, %70, %71 : vector<1x128xf32>
    %cst_19 = arith.constant -1.000000e+30 : f32
    %73 = vector.broadcast %cst_19 : f32 to vector<1x128xf32>
    %74 = arith.select %72, %68, %73 : vector<1x128xi1>, vector<1x128xf32>
    %cst_20 = arith.constant dense<0xFF800000> : vector<1xf32>
    %75 = vector.multi_reduction <maximumf>, %74, %cst_20 [1] : vector<1x128xf32> to vector<1xf32>
    %76 = vector.shape_cast %75 : vector<1xf32> to vector<1x1xf32>
    %77 = vector.broadcast %76 : vector<1x1xf32> to vector<1x128xf32>
    %78 = arith.subf %74, %77 : vector<1x128xf32>
    %79 = math.exp %78 : vector<1x128xf32>
    %cst_21 = arith.constant dense<0.000000e+00> : vector<1x128xf32>
    %80 = tpu.matmul %79, %3, %cst_21 {dimension_numbers = #tpu.dot_dimension_numbers<[1], [0], [0], [1], [0, 0, 1, 1], [], []>} : vector<1x128xf32>, vector<128x128xf32>, vector<1x128xf32> -> vector<1x128xf32>
    %cst_22 = arith.constant 1.000000e+00 : f32
    %81 = vector.broadcast %cst_22 : f32 to vector<1x128xf32>
    %82 = arith.select %72, %80, %81 : vector<1x128xi1>, vector<1x128xf32>
    %83 = tpu.reciprocal %82 : vector<1x128xf32> -> vector<1x128xf32>
    %84 = arith.mulf %79, %83 : vector<1x128xf32>
    %cst_23 = arith.constant 0.000000e+00 : f32
    %85 = vector.broadcast %cst_23 : f32 to vector<1x128xf32>
    %86 = arith.select %72, %84, %85 : vector<1x128xi1>, vector<1x128xf32>
    %c0_24 = arith.constant 0 : index
    %c0_25 = arith.constant 0 : index
    %87 = vector.load %arg4[%c0_24, %c0_25] : memref<1x128xf32, #tpu.memory_space<vmem>>, vector<1x128xf32>
    tpu.vector_store %arg4[%c0_24, %c0_25], %86 {strides = array<i32>} : memref<1x128xf32, #tpu.memory_space<vmem>>, vector<1x128xf32>,
    return
  }
  func.func @transform_0(%arg0: i32) -> (i32, i32) {
    %c0_i32 = arith.constant 0 : i32
    %c0_i32_0 = arith.constant 0 : i32
    return %c0_i32, %arg0 : i32, i32
  }
  func.func @transform_1(%arg0: i32) -> (i32, i32, i32) {
    %c0_i32 = arith.constant 0 : i32
    %c0_i32_0 = arith.constant 0 : i32
    return %c0_i32, %arg0, %arg0 : i32, i32, i32
  }
  func.func @transform_2(%arg0: i32) -> (i32, i32) {
    %c0_i32 = arith.constant 0 : i32
    %c0_i32_0 = arith.constant 0 : i32
    %c0_i32_1 = arith.constant 0 : i32
    return %c0_i32, %c0_i32_0 : i32, i32
  }
  func.func @transform_3(%arg0: i32) -> (i32, i32) {
    %c0_i32 = arith.constant 0 : i32
    %c0_i32_0 = arith.constant 0 : i32
    return %c0_i32, %arg0 : i32, i32
  }
}

</mosaic_0001>

<llo_original>
// kernel: tpu_custom_call.1
$region0: #{tpu_custom_call.1}
  #allocation0 [shape = 'u32[]', space=smem, size = 0x4, offset = 0x4, fixed_abs, tag = 'smem constant byte address 0x4 - core index']
  #allocation1 [shape = 'u32[144,128]{1,0:T(1,128)}', space=vmem, size = 0x12000, scoped, tag = 'internal scratch']
  #allocation6 [shape = 's32[]', space=sflag, size = 0x4, offset = 0, fixed_abs, tag = 'sflag constant byte address 0x0 - dummy sync flag']
  %s0 = inlined_call_operand.vmem [shape: f32[6,256], index: 0, kind: input, shape index: {}]
  %s1 = inlined_call_operand.hbm [shape: f32[2,256,256], index: 1, kind: input, shape index: {}]
  %s2 = inlined_call_operand.vmem [shape: f32[144,32], index: 2, kind: input, shape index: {}]
  %s3 = inlined_call_operand.hbm [shape: f32[1,256], index: 3, kind: output, shape index: {}]
  %s4 = sld [smem:[#allocation0]]
  $region49: #{tpu_custom_call.1} parent=0
    _
  %s6 = ssub.s32 1, %s4
  %s7 = scalar_select 0, %s6, %s4
  $region1: #{tpu_custom_call.1} parent=0
    #allocation2 [shape = 'u8[262144]{0}', space=vmem, size = 0x40000, scoped, tag = 'input window, operand 1']
    #allocation3 [shape = 's32[2]{0}', space=sflag, size = 0x8, scoped, tag = 'scoped memory for tpu_custom_call.1']
    #allocation4 [shape = 's32[2]{0}', space=sflag, size = 0x8, scoped, tag = 'scoped memory for tpu_custom_call.1']
    #allocation5 [shape = 'u8[1024]{0}', space=vmem, size = 0x400, scoped, tag = 'output window, operand 0']
    %8 = vsyncpa [#allocation3], 0
    %s9 = scalar_lea.sflag [#allocation3], 1
    %10 = vsyncpa %s9, 0
    %11 = vsyncpa [#allocation4], 0
    %s12 = scalar_lea.sflag [#allocation4], 1
    %13 = vsyncpa %s12, 0
    loop: start=0, step=1, limit=4
    $region2: #{tpu_custom_call.1} parent=1 // loop_pre_header
      _
    $region3: #{tpu_custom_call.1} parent=1 // loop_header
      %s15 = sphi 0, %s19
      %p16 = scmp.ge.s32.totalorder %s15, 4
      %s25 = sphi 0, %s27
      %s28 = sphi 0, %s25
      %s29 = sphi 0, %s28
      %s45 = sphi 0, %s29
      %s53 = sphi 0, %s55
      %s56 = sphi 0, %s53
      %s57 = sphi 0, %s56
      %s73 = sphi 0, %s57
      %s77 = sphi 0, %s77
      %s79 = sphi 0, %s77
      %s80 = sphi 0, %s79
      %s94 = sphi 0, %s80
      %s100 = sphi 0, %s102
      %s103 = sphi 0, %s100
      %s104 = sphi 0, %s103
      %s120 = sphi 0, %s104
    $region4: #{tpu_custom_call.1} parent=1 // loop_header_branch
      %18 = sbr.rel (%p16) target = $region8
    $region5: #{tpu_custom_call.1} parent=1 // loop_body
      %s20 = ssub.s32 %s15, 1
      %s21 = ssub.s32 %s15, 2
      %s22 = sadd.s32 %s15, 1
      %s23 = ssub.s32 %s15, %s22
      %p24 = scmp.eq.s32.totalorder %s23, 0
      %s26 = sadd.s32 %s25, 1
      %s27 = scalar_select %p24, %s25, %s26
      %p30 = pneg %p24
      %p31 = scmp.eq.s32.totalorder %s15, 1
      %p32 = por %p30, %p31
      %p33 = scmp.ne.s32.totalorder %s25, %s28
      %p34 = scmp.eq.s32.totalorder %s15, 0
      %p35 = por %p33, %p34
      %p36 = scmp.ne.s32.totalorder %s25, %s28
      %p37 = scmp.eq.s32.totalorder %s20, 1
      %p38 = por %p36, %p37
      %p39 = scmp.ne.s32.totalorder %s28, %s29
      %p40 = scmp.eq.s32.totalorder %s20, 0
      %p41 = por %p39, %p40
      %p42 = scmp.ne.s32.totalorder %s28, %s29
      %p43 = scmp.eq.s32.totalorder %s21, 1
      %p44 = por %p42, %p43
      %p46 = scmp.ne.s32.totalorder %s29, %s45
      %p47 = scmp.eq.s32.totalorder %s21, 0
      %p48 = por %p46, %p47
      %s49 = ssub.s32 %s15, %s22
      %s50 = ssub.s32 %s15, %s22
      %s51 = sor.u32 %s49, %s50
      %p52 = scmp.eq.s32.totalorder %s51, 0
      %s54 = sadd.s32 %s53, 1
      %s55 = scalar_select %p52, %s53, %s54
      %p58 = pneg %p52
      %p59 = scmp.eq.s32.totalorder %s15, 1
      %p60 = por %p58, %p59
      %p61 = scmp.ne.s32.totalorder %s53, %s56
      %p62 = scmp.eq.s32.totalorder %s15, 0
      %p63 = por %p61, %p62
      %p64 = scmp.ne.s32.totalorder %s53, %s56
      %p65 = scmp.eq.s32.totalorder %s20, 1
      %p66 = por %p64, %p65
      %p67 = scmp.ne.s32.totalorder %s56, %s57
      %p68 = scmp.eq.s32.totalorder %s20, 0
      %p69 = por %p67, %p68
      %p70 = scmp.ne.s32.totalorder %s56, %s57
      %p71 = scmp.eq.s32.totalorder %s21, 1
      %p72 = por %p70, %p71
      %p74 = scmp.ne.s32.totalorder %s57, %s73
      %p75 = scmp.eq.s32.totalorder %s21, 0
      %p76 = por %p74, %p75
      %s78 = sadd.s32 %s77, 1
      %p81 = scmp.eq.s32.totalorder %s15, 1
      %p82 = scmp.ne.s32.totalorder %s77, %s79
      %p83 = scmp.eq.s32.totalorder %s15, 0
      %p84 = por %p82, %p83
      %p85 = scmp.ne.s32.totalorder %s77, %s79
      %p86 = scmp.eq.s32.totalorder %s20, 1
      %p87 = por %p85, %p86
      %p88 = scmp.ne.s32.totalorder %s79, %s80
      %p89 = scmp.eq.s32.totalorder %s20, 0
      %p90 = por %p88, %p89
      %p91 = scmp.ne.s32.totalorder %s79, %s80
      %p92 = scmp.eq.s32.totalorder %s21, 1
      %p93 = por %p91, %p92
      %p95 = scmp.ne.s32.totalorder %s80, %s94
      %p96 = scmp.eq.s32.totalorder %s21, 0
      %p97 = por %p95, %p96
      %s98 = ssub.s32 %s15, %s22
      %p99 = scmp.eq.s32.totalorder %s98, 0
      %s101 = sadd.s32 %s100, 1
      %s102 = scalar_select %p99, %s100, %s101
      %p105 = pneg %p99
      %p106 = scmp.eq.s32.totalorder %s15, 1
      %p107 = por %p105, %p106
      %p108 = scmp.ne.s32.totalorder %s100, %s103
      %p109 = scmp.eq.s32.totalorder %s15, 0
      %p110 = por %p108, %p109
      %p111 = scmp.ne.s32.totalorder %s100, %s103
      %p112 = scmp.eq.s32.totalorder %s20, 1
      %p113 = por %p111, %p112
      %p114 = scmp.ne.s32.totalorder %s103, %s104
      %p115 = scmp.eq.s32.totalorder %s20, 0
      %p116 = por %p114, %p115
      %p117 = scmp.ne.s32.totalorder %s103, %s104
      %p118 = scmp.eq.s32.totalorder %s21, 1
      %p119 = por %p117, %p118
      %p121 = scmp.ne.s32.totalorder %s104, %s120
      %p122 = scmp.eq.s32.totalorder %s21, 0
      %p123 = por %p121, %p122
      %p124 = scmp.le.s32.totalorder 1, %s15
      %p125 = scmp.lt.s32.totalorder %s15, 3
      %p126 = pnand %p124, %p125
      %p127 = pneg %p126
      // Predicated region
      $region9: #{tpu_custom_call.1} parent=5 // pred_check
        _
      $region10: #{tpu_custom_call.1} parent=5 // pred_check_branch
        %129 = sbr.rel (%p126) target = $region12
      $region11: #{tpu_custom_call.1} parent=5 // pred_region
        %s130 = ssub.s32 %s15, 1
        // Predicated region
        $region13: #{tpu_custom_call.1} parent=11 // pred_check
          %p131 = pneg %p90
        $region14: #{tpu_custom_call.1} parent=11 // pred_check_branch
          %133 = sbr.rel (%p131) target = $region16
        $region15: #{tpu_custom_call.1} parent=11 // pred_region
          _
        $region16: #{tpu_custom_call.1} parent=11 // pred_fallthru
          _
      $region12: #{tpu_custom_call.1} parent=5 // pred_fallthru
        _
      %p134 = scmp.lt.s32.totalorder %s15, 2
      // Predicated region
      $region17: #{tpu_custom_call.1} parent=5 // pred_check
        %p135 = pneg %p134
      $region18: #{tpu_custom_call.1} parent=5 // pred_check_branch
        %137 = sbr.rel (%p135) target = $region20
      $region19: #{tpu_custom_call.1} parent=5 // pred_region
        // Predicated region
        $region21: #{tpu_custom_call.1} parent=19 // pred_check
          %p138 = pneg %p35
        $region22: #{tpu_custom_call.1} parent=19 // pred_check_branch
          %140 = sbr.rel (%p138) target = $region24
        $region23: #{tpu_custom_call.1} parent=19 // pred_region
          %p141 = scmp.lt.s32.totalorder %s15, 1
          %s142 = scalar_select %p141, %s15, 1
          %s143 = smul.addr %s142, 8
          %s144 = scalar_lea.vmem %s0, %s143
        $region24: #{tpu_custom_call.1} parent=19 // pred_fallthru
          _
        // Predicated region
        $region25: #{tpu_custom_call.1} parent=19 // pred_check
          %p145 = pneg %p63
        $region26: #{tpu_custom_call.1} parent=19 // pred_check_branch
          %147 = sbr.rel (%p145) target = $region28
        $region27: #{tpu_custom_call.1} parent=19 // pred_region
          #allocation7 [shape = 'u32[6]{0}', space=smem, size = 0x18, scoped, tag = 'DMA stride descriptor']
          %s148 = sand.u32 %s53, 1
          %s149 = scalar_lea.sflag [#allocation3], %s148
          %s150 = sand.u32 %s53, 1
          %s151 = smul.addr %s150, 256
          %s152 = scalar_lea.vmem [#allocation2], %s151
          %s153 = smul.u32 16, %s15
          %s155 = ssub.s32 4096, 4096
          %156 = vsyncadd %s149, %s155
          %s157 = smul.addr %s153, 2
          %s158 = sadd.s32 %s15, %s157
          %s159 = smul.addr %s158, 128
          %s160 = scalar_lea.hbm %s1, %s159
          %s162 = sshll.u32 1, 14
          %s163 = sxor.u32 4294967295, %s162
          %s165 = sld [smem:[#allocation0]]
          %s166 = sadd.s32 2, %s165
          %s168 = sshll.u32 7, 26
          %s169 = sxor.u32 4294967295, %s168
          %s170 = sand.u32 0, %s169
          %s171 = sshll.u32 %s166, 26
          %s172 = sor.u32 %s170, %s171
          %s173 = sshll.u32 %s152, 4
          %s174 = int_to_ptr.vmem [resolvable:$true] %s173
          %180 = sst [smem:[#allocation7]] 8192
          %s181 = scalar_lea.smem [#allocation7], 1
          %182 = sst [smem:[%s181]] 2048
          %s183 = scalar_lea.smem [#allocation7], 2
          %184 = sst [smem:[%s183]] 16
          %s185 = scalar_lea.smem [#allocation7], 3
          %186 = sst [smem:[%s185]] 256
          %s187 = scalar_lea.smem [#allocation7], 4
          %188 = sst [smem:[%s187]] 128
          %s189 = scalar_lea.smem [#allocation7], 5
          %190 = sst [smem:[%s189]] 8
          %192 = dma.general %s160, 4096, %s174, %s149, [#allocation6], [#allocation7], %s172, 0
        $region28: #{tpu_custom_call.1} parent=19 // pred_fallthru
          _
      $region20: #{tpu_custom_call.1} parent=5 // pred_fallthru
        _
      %p193 = scmp.le.s32.totalorder 1, %s15
      %p194 = scmp.lt.s32.totalorder %s15, 3
      %p195 = pnand %p193, %p194
      %p196 = pneg %p195
      // Predicated region
      $region29: #{tpu_custom_call.1} parent=5 // pred_check
        _
      $region30: #{tpu_custom_call.1} parent=5 // pred_check_branch
        %198 = sbr.rel (%p195) target = $region32
      $region31: #{tpu_custom_call.1} parent=5 // pred_region
        %s199 = ssub.s32 %s15, 1
        %s200 = sand.u32 %s56, 1
        %s201 = scalar_lea.sflag [#allocation3], %s200
        %s202 = sand.u32 %s56, 1
        %s203 = smul.addr %s202, 256
        %s204 = scalar_lea.vmem [#allocation2], %s203
        // Predicated region
        $region33: #{tpu_custom_call.1} parent=31 // pred_check
          %p205 = pneg %p69
        $region34: #{tpu_custom_call.1} parent=31 // pred_check_branch
          %207 = sbr.rel (%p205) target = $region36
        $region35: #{tpu_custom_call.1} parent=31 // pred_region
          %208 = dma.done %s201, 4096
        $region36: #{tpu_custom_call.1} parent=31 // pred_fallthru
          _
        %p209 = scmp.lt.s32.totalorder %s20, 1
        %s210 = scalar_select %p209, %s20, 1
        %s211 = smul.addr %s210, 8
        %s212 = scalar_lea.vmem %s0, %s211
        %p213 = pneg %p41
        %p214 = pneg %p38
        %s215 = sand.u32 %s56, 1
        %s216 = scalar_lea.sflag [#allocation3], %s215
        %s217 = sand.u32 %s56, 1
        %s218 = smul.addr %s217, 256
        %s219 = scalar_lea.vmem [#allocation2], %s218
        %p220 = pneg %p69
        %p221 = pneg %p66
        %p222 = pneg %p90
        %p223 = pneg %p87
        %p224 = pneg %p116
        %p225 = pneg %p113
        %s226 = sand.u32 %s103, 1
        %s227 = scalar_lea.sflag [#allocation4], %s226
        %s228 = sand.u32 %s103, 1
        %s229 = scalar_lea.vmem [#allocation5], %s228
        %p230 = scmp.lt.s32.totalorder %s20, 1
        %s231 = scalar_select %p230, %s20, 1
        %s232 = smul.addr %s231, 8
        %s233 = scalar_lea.vmem %s0, %s232
        %s234 = smul.u32 16, %s20
        %v235 = vld [vmem:[%s204] sm:$0xff]
        %v236 = vld [vmem:[%s204 + $0x8] sm:$0xff]
        %v237 = vld [vmem:[%s204 + $0x10] sm:$0xff]
        %v238 = vld [vmem:[%s204 + $0x18] sm:$0xff]
        %v239 = vld [vmem:[%s204 + $0x20] sm:$0xff]
        %v240 = vld [vmem:[%s204 + $0x28] sm:$0xff]
        %v241 = vld [vmem:[%s204 + $0x30] sm:$0xff]
        %v242 = vld [vmem:[%s204 + $0x38] sm:$0xff]
        %v243 = vld [vmem:[%s204 + $0x40] sm:$0xff]
        %v244 = vld [vmem:[%s204 + $0x48] sm:$0xff]
        %v245 = vld [vmem:[%s204 + $0x50] sm:$0xff]
        %v246 = vld [vmem:[%s204 + $0x58] sm:$0xff]
        %v247 = vld [vmem:[%s204 + $0x60] sm:$0xff]
        %v248 = vld [vmem:[%s204 + $0x68] sm:$0xff]
        %v249 = vld [vmem:[%s204 + $0x70] sm:$0xff]
        %v250 = vld [vmem:[%s204 + $0x78] sm:$0xff]
        %s251 = scalar_lea.vmem %s204, 128 [#allocation2]
        %v252 = vld [vmem:[%s251] sm:$0xff]
        %v253 = vld [vmem:[%s251 + $0x8] sm:$0xff]
        %v254 = vld [vmem:[%s251 + $0x10] sm:$0xff]
        %v255 = vld [vmem:[%s251 + $0x18] sm:$0xff]
        %v256 = vld [vmem:[%s251 + $0x20] sm:$0xff]
        %v257 = vld [vmem:[%s251 + $0x28] sm:$0xff]
        %v258 = vld [vmem:[%s251 + $0x30] sm:$0xff]
        %v259 = vld [vmem:[%s251 + $0x38] sm:$0xff]
        %v260 = vld [vmem:[%s251 + $0x40] sm:$0xff]
        %v261 = vld [vmem:[%s251 + $0x48] sm:$0xff]
        %v262 = vld [vmem:[%s251 + $0x50] sm:$0xff]
        %v263 = vld [vmem:[%s251 + $0x58] sm:$0xff]
        %v264 = vld [vmem:[%s251 + $0x60] sm:$0xff]
        %v265 = vld [vmem:[%s251 + $0x68] sm:$0xff]
        %v266 = vld [vmem:[%s251 + $0x70] sm:$0xff]
        %v267 = vld [vmem:[%s251 + $0x78] sm:$0xff]
        %v268 = vld [vmem:[%s233] sm:$0x3f]
        %v269 = vld [vmem:[%s2] sm:$0xff]
        %v270 = vld [vmem:[%s2 + $0x8] sm:$0xff]
        %v271 = vld [vmem:[%s2 + $0x10] sm:$0xff]
        %v272 = vld [vmem:[%s2 + $0x18] sm:$0xff]
        %v273 = vld [vmem:[%s2 + $0x20] sm:$0xff]
        %v274 = vld [vmem:[%s2 + $0x28] sm:$0xff]
        %v275 = vld [vmem:[%s2 + $0x30] sm:$0xff]
        %v276 = vld [vmem:[%s2 + $0x38] sm:$0xff]
        %v277 = vld [vmem:[%s2 + $0x40] sm:$0xff]
        %v278 = vld [vmem:[%s2 + $0x48] sm:$0xff]
        %v279 = vld [vmem:[%s2 + $0x50] sm:$0xff]
        %v280 = vld [vmem:[%s2 + $0x58] sm:$0xff]
        %v281 = vld [vmem:[%s2 + $0x60] sm:$0xff]
        %v282 = vld [vmem:[%s2 + $0x68] sm:$0xff]
        %v283 = vld [vmem:[%s2 + $0x70] sm:$0xff]
        %v284 = vld [vmem:[%s2 + $0x78] sm:$0xff]
        %v285 = vld [vmem:[%s2 + $0x80] sm:$0xff]
        %v286 = vld [vmem:[%s2 + $0x88] sm:$0xff]
        %288 = vset.pattern.permute.xlu0 0
        %289 = vperm.xlu0 %288, %v269
        %v290 = vpop.permute.xlu0 %289
        %293 = vset.pattern.permute.xlu0 0
        %294 = vperm.xlu0 %293, %v270
        %v295 = vpop.permute.xlu0 %294
        %298 = vset.pattern.permute.xlu0 0
        %299 = vperm.xlu0 %298, %v271
        %v300 = vpop.permute.xlu0 %299
        %303 = vset.pattern.permute.xlu0 0
        %304 = vperm.xlu0 %303, %v272
        %v305 = vpop.permute.xlu0 %304
        %308 = vset.pattern.permute.xlu0 0
        %309 = vperm.xlu0 %308, %v273
        %v310 = vpop.permute.xlu0 %309
        %313 = vset.pattern.permute.xlu0 0
        %314 = vperm.xlu0 %313, %v274
        %v315 = vpop.permute.xlu0 %314
        %318 = vset.pattern.permute.xlu0 0
        %319 = vperm.xlu0 %318, %v275
        %v320 = vpop.permute.xlu0 %319
        %323 = vset.pattern.permute.xlu0 0
        %324 = vperm.xlu0 %323, %v276
        %v325 = vpop.permute.xlu0 %324
        %328 = vset.pattern.permute.xlu0 0
        %329 = vperm.xlu0 %328, %v277
        %v330 = vpop.permute.xlu0 %329
        %v332 = vlaneseq
        %v333 = vshrl.u32 %v332, 7
        %v334 = vsub.s32 0, %v333
        %v335 = vrot.slane %v268, %v334
        %v336 = vmul.f32 %v290, %v335
        %v337 = vmul.f32 %v295, %v335
        %v338 = vmul.f32 %v300, %v335
        %v339 = vmul.f32 %v305, %v335
        %v340 = vmul.f32 %v310, %v335
        %v341 = vmul.f32 %v315, %v335
        %v342 = vmul.f32 %v320, %v335
        %v343 = vmul.f32 %v325, %v335
        %v344 = vmul.f32 %v330, %v335
        %345 = vset.pattern.permute.xlu0 5
        %346 = vperm.xlu0 %345, %v269
        %v347 = vpop.permute.xlu0 %346
        %349 = vset.pattern.permute.xlu0 5
        %350 = vperm.xlu0 %349, %v270
        %v351 = vpop.permute.xlu0 %350
        %353 = vset.pattern.permute.xlu0 5
        %354 = vperm.xlu0 %353, %v271
        %v355 = vpop.permute.xlu0 %354
        %357 = vset.pattern.permute.xlu0 5
        %358 = vperm.xlu0 %357, %v272
        %v359 = vpop.permute.xlu0 %358
        %361 = vset.pattern.permute.xlu0 5
        %362 = vperm.xlu0 %361, %v273
        %v363 = vpop.permute.xlu0 %362
        %365 = vset.pattern.permute.xlu0 5
        %366 = vperm.xlu0 %365, %v274
        %v367 = vpop.permute.xlu0 %366
        %369 = vset.pattern.permute.xlu0 5
        %370 = vperm.xlu0 %369, %v275
        %v371 = vpop.permute.xlu0 %370
        %373 = vset.pattern.permute.xlu0 5
        %374 = vperm.xlu0 %373, %v276
        %v375 = vpop.permute.xlu0 %374
        %377 = vset.pattern.permute.xlu0 5
        %378 = vperm.xlu0 %377, %v277
        %v379 = vpop.permute.xlu0 %378
        %v381 = vadd.f32 %v347, %v336
        %v382 = vadd.f32 %v351, %v337
        %v383 = vadd.f32 %v355, %v338
        %v384 = vadd.f32 %v359, %v339
        %v385 = vadd.f32 %v363, %v340
        %v386 = vadd.f32 %v367, %v341
        %v387 = vadd.f32 %v371, %v342
        %v388 = vadd.f32 %v375, %v343
        %v389 = vadd.f32 %v379, %v344
        %390 = vset.pattern.permute.xlu0 1
        %391 = vperm.xlu0 %390, %v269
        %v392 = vpop.permute.xlu0 %391
        %394 = vset.pattern.permute.xlu0 1
        %395 = vperm.xlu0 %394, %v270
        %v396 = vpop.permute.xlu0 %395
        %398 = vset.pattern.permute.xlu0 1
        %399 = vperm.xlu0 %398, %v271
        %v400 = vpop.permute.xlu0 %399
        %402 = vset.pattern.permute.xlu0 1
        %403 = vperm.xlu0 %402, %v272
        %v404 = vpop.permute.xlu0 %403
        %406 = vset.pattern.permute.xlu0 1
        %407 = vperm.xlu0 %406, %v273
        %v408 = vpop.permute.xlu0 %407
        %410 = vset.pattern.permute.xlu0 1
        %411 = vperm.xlu0 %410, %v274
        %v412 = vpop.permute.xlu0 %411
        %414 = vset.pattern.permute.xlu0 1
        %415 = vperm.xlu0 %414, %v275
        %v416 = vpop.permute.xlu0 %415
        %418 = vset.pattern.permute.xlu0 1
        %419 = vperm.xlu0 %418, %v276
        %v420 = vpop.permute.xlu0 %419
        %422 = vset.pattern.permute.xlu0 1
        %423 = vperm.xlu0 %422, %v277
        %v424 = vpop.permute.xlu0 %423
        %v426 = vlaneseq
        %v427 = vshrl.u32 %v426, 7
        %v428 = vsub.s32 1, %v427
        %v429 = vrot.slane %v268, %v428
        %v430 = vmul.f32 %v392, %v429
        %v431 = vmul.f32 %v396, %v429
        %v432 = vmul.f32 %v400, %v429
        %v433 = vmul.f32 %v404, %v429
        %v434 = vmul.f32 %v408, %v429
        %v435 = vmul.f32 %v412, %v429
        %v436 = vmul.f32 %v416, %v429
        %v437 = vmul.f32 %v420, %v429
        %v438 = vmul.f32 %v424, %v429
        %v439 = vadd.f32 %v381, %v430
        %v440 = vadd.f32 %v382, %v431
        %v441 = vadd.f32 %v383, %v432
        %v442 = vadd.f32 %v384, %v433
        %v443 = vadd.f32 %v385, %v434
        %v444 = vadd.f32 %v386, %v435
        %v445 = vadd.f32 %v387, %v436
        %v446 = vadd.f32 %v388, %v437
        %v447 = vadd.f32 %v389, %v438
        %448 = vset.pattern.permute.xlu0 2
        %449 = vperm.xlu0 %448, %v269
        %v450 = vpop.permute.xlu0 %449
        %452 = vset.pattern.permute.xlu0 2
        %453 = vperm.xlu0 %452, %v270
        %v454 = vpop.permute.xlu0 %453
        %456 = vset.pattern.permute.xlu0 2
        %457 = vperm.xlu0 %456, %v271
        %v458 = vpop.permute.xlu0 %457
        %460 = vset.pattern.permute.xlu0 2
        %461 = vperm.xlu0 %460, %v272
        %v462 = vpop.permute.xlu0 %461
        %464 = vset.pattern.permute.xlu0 2
        %465 = vperm.xlu0 %464, %v273
        %v466 = vpop.permute.xlu0 %465
        %468 = vset.pattern.permute.xlu0 2
        %469 = vperm.xlu0 %468, %v274
        %v470 = vpop.permute.xlu0 %469
        %472 = vset.pattern.permute.xlu0 2
        %473 = vperm.xlu0 %472, %v275
        %v474 = vpop.permute.xlu0 %473
        %476 = vset.pattern.permute.xlu0 2
        %477 = vperm.xlu0 %476, %v276
        %v478 = vpop.permute.xlu0 %477
        %480 = vset.pattern.permute.xlu0 2
        %481 = vperm.xlu0 %480, %v277
        %v482 = vpop.permute.xlu0 %481
        %v484 = vlaneseq
        %v485 = vshrl.u32 %v484, 7
        %v486 = vsub.s32 2, %v485
        %v487 = vrot.slane %v268, %v486
        %v488 = vmul.f32 %v450, %v487
        %v489 = vmul.f32 %v454, %v487
        %v490 = vmul.f32 %v458, %v487
        %v491 = vmul.f32 %v462, %v487
        %v492 = vmul.f32 %v466, %v487
        %v493 = vmul.f32 %v470, %v487
        %v494 = vmul.f32 %v474, %v487
        %v495 = vmul.f32 %v478, %v487
        %v496 = vmul.f32 %v482, %v487
        %v497 = vadd.f32 %v439, %v488
        %v498 = vadd.f32 %v440, %v489
        %v499 = vadd.f32 %v441, %v490
        %v500 = vadd.f32 %v442, %v491
        %v501 = vadd.f32 %v443, %v492
        %v502 = vadd.f32 %v444, %v493
        %v503 = vadd.f32 %v445, %v494
        %v504 = vadd.f32 %v446, %v495
        %v505 = vadd.f32 %v447, %v496
        %506 = vset.pattern.permute.xlu0 3
        %507 = vperm.xlu0 %506, %v269
        %v508 = vpop.permute.xlu0 %507
        %510 = vset.pattern.permute.xlu0 3
        %511 = vperm.xlu0 %510, %v270
        %v512 = vpop.permute.xlu0 %511
        %514 = vset.pattern.permute.xlu0 3
        %515 = vperm.xlu0 %514, %v271
        %v516 = vpop.permute.xlu0 %515
        %518 = vset.pattern.permute.xlu0 3
        %519 = vperm.xlu0 %518, %v272
        %v520 = vpop.permute.xlu0 %519
        %522 = vset.pattern.permute.xlu0 3
        %523 = vperm.xlu0 %522, %v273
        %v524 = vpop.permute.xlu0 %523
        %526 = vset.pattern.permute.xlu0 3
        %527 = vperm.xlu0 %526, %v274
        %v528 = vpop.permute.xlu0 %527
        %530 = vset.pattern.permute.xlu0 3
        %531 = vperm.xlu0 %530, %v275
        %v532 = vpop.permute.xlu0 %531
        %534 = vset.pattern.permute.xlu0 3
        %535 = vperm.xlu0 %534, %v276
        %v536 = vpop.permute.xlu0 %535
        %538 = vset.pattern.permute.xlu0 3
        %539 = vperm.xlu0 %538, %v277
        %v540 = vpop.permute.xlu0 %539
        %v542 = vlaneseq
        %v543 = vshrl.u32 %v542, 7
        %v544 = vsub.s32 3, %v543
        %v545 = vrot.slane %v268, %v544
        %v546 = vmul.f32 %v508, %v545
        %v547 = vmul.f32 %v512, %v545
        %v548 = vmul.f32 %v516, %v545
        %v549 = vmul.f32 %v520, %v545
        %v550 = vmul.f32 %v524, %v545
        %v551 = vmul.f32 %v528, %v545
        %v552 = vmul.f32 %v532, %v545
        %v553 = vmul.f32 %v536, %v545
        %v554 = vmul.f32 %v540, %v545
        %v555 = vadd.f32 %v497, %v546
        %v556 = vadd.f32 %v498, %v547
        %v557 = vadd.f32 %v499, %v548
        %v558 = vadd.f32 %v500, %v549
        %v559 = vadd.f32 %v501, %v550
        %v560 = vadd.f32 %v502, %v551
        %v561 = vadd.f32 %v503, %v552
        %v562 = vadd.f32 %v504, %v553
        %v563 = vadd.f32 %v505, %v554
        %564 = vset.pattern.permute.xlu0 4
        %565 = vperm.xlu0 %564, %v269
        %v566 = vpop.permute.xlu0 %565
        %568 = vset.pattern.permute.xlu0 4
        %569 = vperm.xlu0 %568, %v270
        %v570 = vpop.permute.xlu0 %569
        %572 = vset.pattern.permute.xlu0 4
        %573 = vperm.xlu0 %572, %v271
        %v574 = vpop.permute.xlu0 %573
        %576 = vset.pattern.permute.xlu0 4
        %577 = vperm.xlu0 %576, %v272
        %v578 = vpop.permute.xlu0 %577
        %580 = vset.pattern.permute.xlu0 4
        %581 = vperm.xlu0 %580, %v273
        %v582 = vpop.permute.xlu0 %581
        %584 = vset.pattern.permute.xlu0 4
        %585 = vperm.xlu0 %584, %v274
        %v586 = vpop.permute.xlu0 %585
        %588 = vset.pattern.permute.xlu0 4
        %589 = vperm.xlu0 %588, %v275
        %v590 = vpop.permute.xlu0 %589
        %592 = vset.pattern.permute.xlu0 4
        %593 = vperm.xlu0 %592, %v276
        %v594 = vpop.permute.xlu0 %593
        %596 = vset.pattern.permute.xlu0 4
        %597 = vperm.xlu0 %596, %v277
        %v598 = vpop.permute.xlu0 %597
        %v600 = vlaneseq
        %v601 = vshrl.u32 %v600, 7
        %v602 = vsub.s32 4, %v601
        %v603 = vrot.slane %v268, %v602
        %v604 = vmul.f32 %v566, %v603
        %v605 = vmul.f32 %v570, %v603
        %v606 = vmul.f32 %v574, %v603
        %v607 = vmul.f32 %v578, %v603
        %v608 = vmul.f32 %v582, %v603
        %v609 = vmul.f32 %v586, %v603
        %v610 = vmul.f32 %v590, %v603
        %v611 = vmul.f32 %v594, %v603
        %v612 = vmul.f32 %v598, %v603
        %v613 = vadd.f32 %v555, %v604
        %v614 = vadd.f32 %v556, %v605
        %v615 = vadd.f32 %v557, %v606
        %v616 = vadd.f32 %v558, %v607
        %v617 = vadd.f32 %v559, %v608
        %v618 = vadd.f32 %v560, %v609
        %v619 = vadd.f32 %v561, %v610
        %v620 = vadd.f32 %v562, %v611
        %v621 = vadd.f32 %v563, %v612
        %v622 = vmul.f32 %v268, 3.0
        %v624 = vrot.slane %v268, 5
        %626 = vmatprep.subr.mxu0 0.0
        %627 = vmatpush1.msra.mxu0 %v235
        %628 = vmatprep.subr.mxu0 0.0
        %629 = vmatpush1.msra.mxu0 %v236
        %630 = vmatprep.subr.mxu0 0.0
        %631 = vmatpush1.msra.mxu0 %v237
        %632 = vmatprep.subr.mxu0 0.0
        %633 = vmatpush1.msra.mxu0 %v238
        %634 = vmatprep.subr.mxu0 0.0
        %635 = vmatpush1.msra.mxu0 %v239
        %636 = vmatprep.subr.mxu0 0.0
        %637 = vmatpush1.msra.mxu0 %v240
        %638 = vmatprep.subr.mxu0 0.0
        %639 = vmatpush1.msra.mxu0 %v241
        %640 = vmatprep.subr.mxu0 0.0
        %641 = vmatpush1.msra.mxu0 %v242
        %642 = vmatprep.subr.mxu0 0.0
        %643 = vmatpush1.msra.mxu0 %v243
        %644 = vmatprep.subr.mxu0 0.0
        %645 = vmatpush1.msra.mxu0 %v244
        %646 = vmatprep.subr.mxu0 0.0
        %647 = vmatpush1.msra.mxu0 %v245
        %648 = vmatprep.subr.mxu0 0.0
        %649 = vmatpush1.msra.mxu0 %v246
        %650 = vmatprep.subr.mxu0 0.0
        %651 = vmatpush1.msra.mxu0 %v247
        %652 = vmatprep.subr.mxu0 0.0
        %653 = vmatpush1.msra.mxu0 %v248
        %654 = vmatprep.subr.mxu0 0.0
        %655 = vmatpush1.msra.mxu0 %v249
        %656 = vmatprep.subr.mxu0 0.0
        %657 = vmatpush1.msra.mxu0 %v250
        %658 = vmatprep.subr.mxu0 0.0
        %659 = vmatpush1.msra.mxu0 0.0
        %660 = vmatprep.subr.mxu0 0.0
        %661 = vmatpush1.msra.mxu0 0.0
        %662 = vmatprep.subr.mxu0 0.0
        %663 = vmatpush1.msra.mxu0 0.0
        %664 = vmatprep.subr.mxu0 0.0
        %665 = vmatpush1.msra.mxu0 0.0
        %666 = vmatprep.subr.mxu0 0.0
        %667 = vmatpush1.msra.mxu0 0.0
        %668 = vmatprep.subr.mxu0 0.0
        %669 = vmatpush1.msra.mxu0 0.0
        %670 = vmatprep.subr.mxu0 0.0
        %671 = vmatpush1.msra.mxu0 0.0
        %672 = vmatprep.subr.mxu0 0.0
        %673 = vmatpush1.msra.mxu0 0.0
        %674 = vmatprep.subr.mxu0 0.0
        %675 = vmatpush1.msra.mxu0 0.0
        %676 = vmatprep.subr.mxu0 0.0
        %677 = vmatpush1.msra.mxu0 0.0
        %678 = vmatprep.subr.mxu0 0.0
        %679 = vmatpush1.msra.mxu0 0.0
        %680 = vmatprep.subr.mxu0 0.0
        %681 = vmatpush1.msra.mxu0 0.0
        %682 = vmatprep.subr.mxu0 0.0
        %683 = vmatpush1.msra.mxu0 0.0
        %684 = vmatprep.subr.mxu0 0.0
        %685 = vmatpush1.msra.mxu0 0.0
        %686 = vmatprep.subr.mxu0 0.0
        %687 = vmatpush1.msra.mxu0 0.0
        %688 = vmatprep.subr.mxu0 0.0
        %689 = vmatpush1.msra.mxu0 0.0
        %690 = vmatprep.mubr.f32.mxu0 0.0
        %691 = vmatmul.mubr.f32.gmra.mrb[0].mxu0 %v624
        %v692 = vpop.f32.mrb[0].mxu0
        %v693 = vadd.f32 0.0, %v692
        %v694 = vpop.f32.mrb[0].mxu0
        %695 = vdwg.mxu0
        %v697 = vrot.slane %v693, 3
        %v699 = vsub.f32 %v622, %v697
        %701 = vset.pattern.permute.xlu0 0
        %702 = vperm.xlu0 %701, %v278
        %v703 = vpop.permute.xlu0 %702
        %706 = vset.pattern.permute.xlu0 0
        %707 = vperm.xlu0 %706, %v279
        %v708 = vpop.permute.xlu0 %707
        %711 = vset.pattern.permute.xlu0 0
        %712 = vperm.xlu0 %711, %v280
        %v713 = vpop.permute.xlu0 %712
        %716 = vset.pattern.permute.xlu0 0
        %717 = vperm.xlu0 %716, %v281
        %v718 = vpop.permute.xlu0 %717
        %v720 = vlaneseq
        %v721 = vshrl.u32 %v720, 7
        %v722 = vsub.s32 5, %v721
        %v723 = vrot.slane %v699, %v722
        %v724 = vmul.f32 %v703, %v723
        %v725 = vmul.f32 %v708, %v723
        %v726 = vmul.f32 %v713, %v723
        %v727 = vmul.f32 %v718, %v723
        %v728 = vadd.f32 %v613, %v724
        %v729 = vadd.f32 %v614, %v725
        %v730 = vadd.f32 %v615, %v726
        %v731 = vadd.f32 %v616, %v727
        %v732 = vmax.f32 %v728, 0.0
        %v733 = vmax.f32 %v729, 0.0
        %v734 = vmax.f32 %v730, 0.0
        %v735 = vmax.f32 %v731, 0.0
        %v736 = vmul.f32 %v732, 3.0
        %v737 = vmul.f32 %v733, 3.0
        %v738 = vmul.f32 %v734, 3.0
        %v739 = vmul.f32 %v735, 3.0
        %740 = vmatprep.subr.mxu0 0.0
        %741 = vmatpush1.msra.mxu0 %v235
        %742 = vmatprep.subr.mxu0 0.0
        %743 = vmatpush1.msra.mxu0 %v236
        %744 = vmatprep.subr.mxu0 0.0
        %745 = vmatpush1.msra.mxu0 %v237
        %746 = vmatprep.subr.mxu0 0.0
        %747 = vmatpush1.msra.mxu0 %v238
        %748 = vmatprep.subr.mxu0 0.0
        %749 = vmatpush1.msra.mxu0 %v239
        %750 = vmatprep.subr.mxu0 0.0
        %751 = vmatpush1.msra.mxu0 %v240
        %752 = vmatprep.subr.mxu0 0.0
        %753 = vmatpush1.msra.mxu0 %v241
        %754 = vmatprep.subr.mxu0 0.0
        %755 = vmatpush1.msra.mxu0 %v242
        %756 = vmatprep.subr.mxu0 0.0
        %757 = vmatpush1.msra.mxu0 %v243
        %758 = vmatprep.subr.mxu0 0.0
        %759 = vmatpush1.msra.mxu0 %v244
        %760 = vmatprep.subr.mxu0 0.0
        %761 = vmatpush1.msra.mxu0 %v245
        %762 = vmatprep.subr.mxu0 0.0
        %763 = vmatpush1.msra.mxu0 %v246
        %764 = vmatprep.subr.mxu0 0.0
        %765 = vmatpush1.msra.mxu0 %v247
        %766 = vmatprep.subr.mxu0 0.0
        %767 = vmatpush1.msra.mxu0 %v248
        %768 = vmatprep.subr.mxu0 0.0
        %769 = vmatpush1.msra.mxu0 %v249
        %770 = vmatprep.subr.mxu0 0.0
        %771 = vmatpush1.msra.mxu0 %v250
        %772 = vmatprep.subr.mxu0 0.0
        %773 = vmatpush1.msra.mxu0 0.0
        %774 = vmatprep.subr.mxu0 0.0
        %775 = vmatpush1.msra.mxu0 0.0
        %776 = vmatprep.subr.mxu0 0.0
        %777 = vmatpush1.msra.mxu0 0.0
        %778 = vmatprep.subr.mxu0 0.0
        %779 = vmatpush1.msra.mxu0 0.0
        %780 = vmatprep.subr.mxu0 0.0
        %781 = vmatpush1.msra.mxu0 0.0
        %782 = vmatprep.subr.mxu0 0.0
        %783 = vmatpush1.msra.mxu0 0.0
        %784 = vmatprep.subr.mxu0 0.0
        %785 = vmatpush1.msra.mxu0 0.0
        %786 = vmatprep.subr.mxu0 0.0
        %787 = vmatpush1.msra.mxu0 0.0
        %788 = vmatprep.subr.mxu0 0.0
        %789 = vmatpush1.msra.mxu0 0.0
        %790 = vmatprep.subr.mxu0 0.0
        %791 = vmatpush1.msra.mxu0 0.0
        %792 = vmatprep.subr.mxu0 0.0
        %793 = vmatpush1.msra.mxu0 0.0
        %794 = vmatprep.subr.mxu0 0.0
        %795 = vmatpush1.msra.mxu0 0.0
        %796 = vmatprep.subr.mxu0 0.0
        %797 = vmatpush1.msra.mxu0 0.0
        %798 = vmatprep.subr.mxu0 0.0
        %799 = vmatpush1.msra.mxu0 0.0
        %800 = vmatprep.subr.mxu0 0.0
        %801 = vmatpush1.msra.mxu0 0.0
        %802 = vmatprep.subr.mxu0 0.0
        %803 = vmatpush1.msra.mxu0 0.0
        %804 = vmatprep.mubr.f32.mxu0 0.0
        %805 = vmatmul.mubr.f32.gmra.mrb[0].mxu0 %v732
        %v806 = vpop.f32.mrb[0].mxu0
        %v807 = vadd.f32 0.0, %v806
        %v808 = vpop.f32.mrb[0].mxu0
        %809 = vmatprep.mubr.f32.mxu0 0.0
        %810 = vmatmul.mubr.f32.gmra.mrb[0].mxu0 %v733
        %v811 = vpop.f32.mrb[0].mxu0
        %v812 = vadd.f32 0.0, %v811
        %v813 = vpop.f32.mrb[0].mxu0
        %814 = vmatprep.mubr.f32.mxu0 0.0
        %815 = vmatmul.mubr.f32.gmra.mrb[0].mxu0 %v734
        %v816 = vpop.f32.mrb[0].mxu0
        %v817 = vadd.f32 0.0, %v816
        %v818 = vpop.f32.mrb[0].mxu0
        %819 = vmatprep.mubr.f32.mxu0 0.0
        %820 = vmatmul.mubr.f32.gmra.mrb[0].mxu0 %v735
        %v821 = vpop.f32.mrb[0].mxu0
        %v822 = vadd.f32 0.0, %v821
        %v823 = vpop.f32.mrb[0].mxu0
        %824 = vdwg.mxu0
        %v825 = vsub.f32 %v736, %v807
        %v826 = vsub.f32 %v737, %v812
        %v827 = vsub.f32 %v738, %v817
        %v828 = vsub.f32 %v739, %v822
        %vm829 = vcmask 261120
        %v831 = vsel %vm829, %v282, 0
        %v834 = vsel %vm829, %v283, 0
        %v837 = vsel %vm829, %v284, 0
        %v840 = vsel %vm829, %v285, 0
        %842 = vmatprep.subr.mxu0 0.0
        %843 = vmatpush1.msra.mxu0 %v825
        %844 = vmatprep.subr.mxu0 0.0
        %845 = vmatpush1.msra.mxu0 %v826
        %846 = vmatprep.subr.mxu0 0.0
        %847 = vmatpush1.msra.mxu0 %v827
        %848 = vmatprep.subr.mxu0 0.0
        %849 = vmatpush1.msra.mxu0 %v828
        %850 = vmatprep.subr.mxu0 0.0
        %851 = vmatpush1.msra.mxu0 0.0
        %852 = vmatprep.subr.mxu0 0.0
        %853 = vmatpush1.msra.mxu0 0.0
        %854 = vmatprep.subr.mxu0 0.0
        %855 = vmatpush1.msra.mxu0 0.0
        %856 = vmatprep.subr.mxu0 0.0
        %857 = vmatpush1.msra.mxu0 0.0
        %858 = vmatprep.subr.mxu0 0.0
        %859 = vmatpush1.msra.mxu0 0.0
        %860 = vmatprep.subr.mxu0 0.0
        %861 = vmatpush1.msra.mxu0 0.0
        %862 = vmatprep.subr.mxu0 0.0
        %863 = vmatpush1.msra.mxu0 0.0
        %864 = vmatprep.subr.mxu0 0.0
        %865 = vmatpush1.msra.mxu0 0.0
        %866 = vmatprep.subr.mxu0 0.0
        %867 = vmatpush1.msra.mxu0 0.0
        %868 = vmatprep.subr.mxu0 0.0
        %869 = vmatpush1.msra.mxu0 0.0
        %870 = vmatprep.subr.mxu0 0.0
        %871 = vmatpush1.msra.mxu0 0.0
        %872 = vmatprep.subr.mxu0 0.0
        %873 = vmatpush1.msra.mxu0 0.0
        %874 = vmatprep.subr.mxu0 0.0
        %875 = vmatpush1.msra.mxu0 0.0
        %876 = vmatprep.subr.mxu0 0.0
        %877 = vmatpush1.msra.mxu0 0.0
        %878 = vmatprep.subr.mxu0 0.0
        %879 = vmatpush1.msra.mxu0 0.0
        %880 = vmatprep.subr.mxu0 0.0
        %881 = vmatpush1.msra.mxu0 0.0
        %882 = vmatprep.subr.mxu0 0.0
        %883 = vmatpush1.msra.mxu0 0.0
        %884 = vmatprep.subr.mxu0 0.0
        %885 = vmatpush1.msra.mxu0 0.0
        %886 = vmatprep.subr.mxu0 0.0
        %887 = vmatpush1.msra.mxu0 0.0
        %888 = vmatprep.subr.mxu0 0.0
        %889 = vmatpush1.msra.mxu0 0.0
        %890 = vmatprep.subr.mxu0 0.0
        %891 = vmatpush1.msra.mxu0 0.0
        %892 = vmatprep.subr.mxu0 0.0
        %893 = vmatpush1.msra.mxu0 0.0
        %894 = vmatprep.subr.mxu0 0.0
        %895 = vmatpush1.msra.mxu0 0.0
        %896 = vmatprep.subr.mxu0 0.0
        %897 = vmatpush1.msra.mxu0 0.0
        %898 = vmatprep.subr.mxu0 0.0
        %899 = vmatpush1.msra.mxu0 0.0
        %900 = vmatprep.subr.mxu0 0.0
        %901 = vmatpush1.msra.mxu0 0.0
        %902 = vmatprep.subr.mxu0 0.0
        %903 = vmatpush1.msra.mxu0 0.0
        %904 = vmatprep.subr.mxu0 0.0
        %905 = vmatpush1.msra.mxu0 0.0
        %906 = vmatprep.mubr.f32.mxu0 0.0
        %907 = vmatmul.mubr.f32.gmra.mrb[0].mxu0 %v831
        %v908 = vpop.f32.mrb[0].mxu0
        %v909 = vadd.f32 0.0, %v908
        %v910 = vpop.f32.mrb[0].mxu0
        %911 = vmatprep.mubr.f32.mxu0 0.0
        %912 = vmatmul.mubr.f32.gmra.mrb[0].mxu0 %v834
        %v913 = vpop.f32.mrb[0].mxu0
        %v914 = vadd.f32 0.0, %v913
        %v915 = vpop.f32.mrb[0].mxu0
        %916 = vmatprep.mubr.f32.mxu0 0.0
        %917 = vmatmul.mubr.f32.gmra.mrb[0].mxu0 %v837
        %v918 = vpop.f32.mrb[0].mxu0
        %v919 = vadd.f32 0.0, %v918
        %v920 = vpop.f32.mrb[0].mxu0
        %921 = vmatprep.mubr.f32.mxu0 0.0
        %922 = vmatmul.mubr.f32.gmra.mrb[0].mxu0 %v840
        %v923 = vpop.f32.mrb[0].mxu0
        %v924 = vadd.f32 0.0, %v923
        %v925 = vpop.f32.mrb[0].mxu0
        %926 = vdwg.mxu0
        %v927 = vadd.f32 %v617, %v909
        %v928 = vadd.f32 %v618, %v914
        %v929 = vadd.f32 %v619, %v919
        %v930 = vadd.f32 %v620, %v924
        %v931 = vmax.f32 %v927, 0.0
        %v932 = vmax.f32 %v928, 0.0
        %v933 = vmax.f32 %v929, 0.0
        %v934 = vmax.f32 %v930, 0.0
        %v935 = vmul.f32 %v931, 3.0
        %v936 = vmul.f32 %v932, 3.0
        %v937 = vmul.f32 %v933, 3.0
        %v938 = vmul.f32 %v934, 3.0
        %939 = vmatprep.subr.mxu0 0.0
        %940 = vmatpush1.msra.mxu0 %v235
        %941 = vmatprep.subr.mxu0 0.0
        %942 = vmatpush1.msra.mxu0 %v236
        %943 = vmatprep.subr.mxu0 0.0
        %944 = vmatpush1.msra.mxu0 %v237
        %945 = vmatprep.subr.mxu0 0.0
        %946 = vmatpush1.msra.mxu0 %v238
        %947 = vmatprep.subr.mxu0 0.0
        %948 = vmatpush1.msra.mxu0 %v239
        %949 = vmatprep.subr.mxu0 0.0
        %950 = vmatpush1.msra.mxu0 %v240
        %951 = vmatprep.subr.mxu0 0.0
        %952 = vmatpush1.msra.mxu0 %v241
        %953 = vmatprep.subr.mxu0 0.0
        %954 = vmatpush1.msra.mxu0 %v242
        %955 = vmatprep.subr.mxu0 0.0
        %956 = vmatpush1.msra.mxu0 %v243
        %957 = vmatprep.subr.mxu0 0.0
        %958 = vmatpush1.msra.mxu0 %v244
        %959 = vmatprep.subr.mxu0 0.0
        %960 = vmatpush1.msra.mxu0 %v245
        %961 = vmatprep.subr.mxu0 0.0
        %962 = vmatpush1.msra.mxu0 %v246
        %963 = vmatprep.subr.mxu0 0.0
        %964 = vmatpush1.msra.mxu0 %v247
        %965 = vmatprep.subr.mxu0 0.0
        %966 = vmatpush1.msra.mxu0 %v248
        %967 = vmatprep.subr.mxu0 0.0
        %968 = vmatpush1.msra.mxu0 %v249
        %969 = vmatprep.subr.mxu0 0.0
        %970 = vmatpush1.msra.mxu0 %v250
        %971 = vmatprep.subr.mxu0 0.0
        %972 = vmatpush1.msra.mxu0 0.0
        %973 = vmatprep.subr.mxu0 0.0
        %974 = vmatpush1.msra.mxu0 0.0
        %975 = vmatprep.subr.mxu0 0.0
        %976 = vmatpush1.msra.mxu0 0.0
        %977 = vmatprep.subr.mxu0 0.0
        %978 = vmatpush1.msra.mxu0 0.0
        %979 = vmatprep.subr.mxu0 0.0
        %980 = vmatpush1.msra.mxu0 0.0
        %981 = vmatprep.subr.mxu0 0.0
        %982 = vmatpush1.msra.mxu0 0.0
        %983 = vmatprep.subr.mxu0 0.0
        %984 = vmatpush1.msra.mxu0 0.0
        %985 = vmatprep.subr.mxu0 0.0
        %986 = vmatpush1.msra.mxu0 0.0
        %987 = vmatprep.subr.mxu0 0.0
        %988 = vmatpush1.msra.mxu0 0.0
        %989 = vmatprep.subr.mxu0 0.0
        %990 = vmatpush1.msra.mxu0 0.0
        %991 = vmatprep.subr.mxu0 0.0
        %992 = vmatpush1.msra.mxu0 0.0
        %993 = vmatprep.subr.mxu0 0.0
        %994 = vmatpush1.msra.mxu0 0.0
        %995 = vmatprep.subr.mxu0 0.0
        %996 = vmatpush1.msra.mxu0 0.0
        %997 = vmatprep.subr.mxu0 0.0
        %998 = vmatpush1.msra.mxu0 0.0
        %999 = vmatprep.subr.mxu0 0.0
        %1000 = vmatpush1.msra.mxu0 0.0
        %1001 = vmatprep.subr.mxu0 0.0
        %1002 = vmatpush1.msra.mxu0 0.0
        %1003 = vmatprep.mubr.f32.mxu0 0.0
        %1004 = vmatmul.mubr.f32.gmra.mrb[0].mxu0 %v931
        %v1005 = vpop.f32.mrb[0].mxu0
        %v1006 = vadd.f32 0.0, %v1005
        %v1007 = vpop.f32.mrb[0].mxu0
        %1008 = vmatprep.mubr.f32.mxu0 0.0
        %1009 = vmatmul.mubr.f32.gmra.mrb[0].mxu0 %v932
        %v1010 = vpop.f32.mrb[0].mxu0
        %v1011 = vadd.f32 0.0, %v1010
        %v1012 = vpop.f32.mrb[0].mxu0
        %1013 = vmatprep.mubr.f32.mxu0 0.0
        %1014 = vmatmul.mubr.f32.gmra.mrb[0].mxu0 %v933
        %v1015 = vpop.f32.mrb[0].mxu0
        %v1016 = vadd.f32 0.0, %v1015
        %v1017 = vpop.f32.mrb[0].mxu0
        %1018 = vmatprep.mubr.f32.mxu0 0.0
        %1019 = vmatmul.mubr.f32.gmra.mrb[0].mxu0 %v934
        %v1020 = vpop.f32.mrb[0].mxu0
        %v1021 = vadd.f32 0.0, %v1020
        %v1022 = vpop.f32.mrb[0].mxu0
        %1023 = vdwg.mxu0
        %v1024 = vsub.f32 %v935, %v1006
        %v1025 = vsub.f32 %v936, %v1011
        %v1026 = vsub.f32 %v937, %v1016
        %v1027 = vsub.f32 %v938, %v1021
        %v1029 = vsel %vm829, %v286, 0
        %1031 = vmatprep.subr.mxu0 0.0
        %1032 = vmatpush1.msra.mxu0 %v1024
        %1033 = vmatprep.subr.mxu0 0.0
        %1034 = vmatpush1.msra.mxu0 %v1025
        %1035 = vmatprep.subr.mxu0 0.0
        %1036 = vmatpush1.msra.mxu0 %v1026
        %1037 = vmatprep.subr.mxu0 0.0
        %1038 = vmatpush1.msra.mxu0 %v1027
        %1039 = vmatprep.subr.mxu0 0.0
        %1040 = vmatpush1.msra.mxu0 0.0
        %1041 = vmatprep.subr.mxu0 0.0
        %1042 = vmatpush1.msra.mxu0 0.0
        %1043 = vmatprep.subr.mxu0 0.0
        %1044 = vmatpush1.msra.mxu0 0.0
        %1045 = vmatprep.subr.mxu0 0.0
        %1046 = vmatpush1.msra.mxu0 0.0
        %1047 = vmatprep.subr.mxu0 0.0
        %1048 = vmatpush1.msra.mxu0 0.0
        %1049 = vmatprep.subr.mxu0 0.0
        %1050 = vmatpush1.msra.mxu0 0.0
        %1051 = vmatprep.subr.mxu0 0.0
        %1052 = vmatpush1.msra.mxu0 0.0
        %1053 = vmatprep.subr.mxu0 0.0
        %1054 = vmatpush1.msra.mxu0 0.0
        %1055 = vmatprep.subr.mxu0 0.0
        %1056 = vmatpush1.msra.mxu0 0.0
        %1057 = vmatprep.subr.mxu0 0.0
        %1058 = vmatpush1.msra.mxu0 0.0
        %1059 = vmatprep.subr.mxu0 0.0
        %1060 = vmatpush1.msra.mxu0 0.0
        %1061 = vmatprep.subr.mxu0 0.0
        %1062 = vmatpush1.msra.mxu0 0.0
        %1063 = vmatprep.subr.mxu0 0.0
        %1064 = vmatpush1.msra.mxu0 0.0
        %1065 = vmatprep.subr.mxu0 0.0
        %1066 = vmatpush1.msra.mxu0 0.0
        %1067 = vmatprep.subr.mxu0 0.0
        %1068 = vmatpush1.msra.mxu0 0.0
        %1069 = vmatprep.subr.mxu0 0.0
        %1070 = vmatpush1.msra.mxu0 0.0
        %1071 = vmatprep.subr.mxu0 0.0
        %1072 = vmatpush1.msra.mxu0 0.0
        %1073 = vmatprep.subr.mxu0 0.0
        %1074 = vmatpush1.msra.mxu0 0.0
        %1075 = vmatprep.subr.mxu0 0.0
        %1076 = vmatpush1.msra.mxu0 0.0
        %1077 = vmatprep.subr.mxu0 0.0
        %1078 = vmatpush1.msra.mxu0 0.0
        %1079 = vmatprep.subr.mxu0 0.0
        %1080 = vmatpush1.msra.mxu0 0.0
        %1081 = vmatprep.subr.mxu0 0.0
        %1082 = vmatpush1.msra.mxu0 0.0
        %1083 = vmatprep.subr.mxu0 0.0
        %1084 = vmatpush1.msra.mxu0 0.0
        %1085 = vmatprep.subr.mxu0 0.0
        %1086 = vmatpush1.msra.mxu0 0.0
        %1087 = vmatprep.subr.mxu0 0.0
        %1088 = vmatpush1.msra.mxu0 0.0
        %1089 = vmatprep.subr.mxu0 0.0
        %1090 = vmatpush1.msra.mxu0 0.0
        %1091 = vmatprep.subr.mxu0 0.0
        %1092 = vmatpush1.msra.mxu0 0.0
        %1093 = vmatprep.subr.mxu0 0.0
        %1094 = vmatpush1.msra.mxu0 0.0
        %1095 = vmatprep.mubr.f32.mxu0 0.0
        %1096 = vmatmul.mubr.f32.gmra.mrb[0].mxu0 %v1029
        %v1097 = vpop.f32.mrb[0].mxu0
        %v1098 = vadd.f32 0.0, %v1097
        %v1099 = vpop.f32.mrb[0].mxu0
        %1100 = vdwg.mxu0
        %v1101 = vadd.f32 %v621, %v1098
        %v1102 = vadd.f32 %v252, %v253
        %v1103 = vadd.f32 %v1102, %v254
        %v1104 = vadd.f32 %v1103, %v255
        %v1105 = vadd.f32 %v1104, %v256
        %v1106 = vadd.f32 %v1105, %v257
        %v1107 = vadd.f32 %v1106, %v258
        %v1108 = vadd.f32 %v1107, %v259
        %v1109 = vadd.f32 %v1108, %v260
        %v1110 = vadd.f32 %v1109, %v261
        %v1111 = vadd.f32 %v1110, %v262
        %v1112 = vadd.f32 %v1111, %v263
        %v1113 = vadd.f32 %v1112, %v264
        %v1114 = vadd.f32 %v1113, %v265
        %v1115 = vadd.f32 %v1114, %v266
        %v1116 = vadd.f32 %v1115, %v267
        %v1117 = vrot.slane %v1116, 4
        %v1118 = vadd.f32 %v1116, %v1117
        %v1119 = vrot.slane %v1118, 2
        %v1120 = vadd.f32 %v1118, %v1119
        %v1121 = vrot.slane %v1120, 1
        %v1122 = vadd.f32 %v1120, %v1121
        %vm1123 = vcmp.gt.f32.partialorder %v1122, 0.5
        %v1124 = vsel %vm1123, %v1101, -1e+30
        %vm1125 = vcmask 1040384
        %v1126 = vsel %vm1125, %v1124, -inf
        %1127 = vmax.xlane.f32.xlu0 %v1126
        %v1128 = vpop.xlane.xlu0 %1127
        %v1129 = vsub.f32 %v1124, %v1128
        %v1130 = vmul.f32 %v1129, 1.442695
        %v1131 = vpow.pop %v1130
        %1132 = vmatprep.subr.mxu0 0.0
        %1133 = vmatpush1.msra.mxu0 %v252
        %1134 = vmatprep.subr.mxu0 0.0
        %1135 = vmatpush1.msra.mxu0 %v253
        %1136 = vmatprep.subr.mxu0 0.0
        %1137 = vmatpush1.msra.mxu0 %v254
        %1138 = vmatprep.subr.mxu0 0.0
        %1139 = vmatpush1.msra.mxu0 %v255
        %1140 = vmatprep.subr.mxu0 0.0
        %1141 = vmatpush1.msra.mxu0 %v256
        %1142 = vmatprep.subr.mxu0 0.0
        %1143 = vmatpush1.msra.mxu0 %v257
        %1144 = vmatprep.subr.mxu0 0.0
        %1145 = vmatpush1.msra.mxu0 %v258
        %1146 = vmatprep.subr.mxu0 0.0
        %1147 = vmatpush1.msra.mxu0 %v259
        %1148 = vmatprep.subr.mxu0 0.0
        %1149 = vmatpush1.msra.mxu0 %v260
        %1150 = vmatprep.subr.mxu0 0.0
        %1151 = vmatpush1.msra.mxu0 %v261
        %1152 = vmatprep.subr.mxu0 0.0
        %1153 = vmatpush1.msra.mxu0 %v262
        %1154 = vmatprep.subr.mxu0 0.0
        %1155 = vmatpush1.msra.mxu0 %v263
        %1156 = vmatprep.subr.mxu0 0.0
        %1157 = vmatpush1.msra.mxu0 %v264
        %1158 = vmatprep.subr.mxu0 0.0
        %1159 = vmatpush1.msra.mxu0 %v265
        %1160 = vmatprep.subr.mxu0 0.0
        %1161 = vmatpush1.msra.mxu0 %v266
        %1162 = vmatprep.subr.mxu0 0.0
        %1163 = vmatpush1.msra.mxu0 %v267
        %1164 = vmatprep.subr.mxu0 0.0
        %1165 = vmatpush1.msra.mxu0 0.0
        %1166 = vmatprep.subr.mxu0 0.0
        %1167 = vmatpush1.msra.mxu0 0.0
        %1168 = vmatprep.subr.mxu0 0.0
        %1169 = vmatpush1.msra.mxu0 0.0
        %1170 = vmatprep.subr.mxu0 0.0
        %1171 = vmatpush1.msra.mxu0 0.0
        %1172 = vmatprep.subr.mxu0 0.0
        %1173 = vmatpush1.msra.mxu0 0.0
        %1174 = vmatprep.subr.mxu0 0.0
        %1175 = vmatpush1.msra.mxu0 0.0
        %1176 = vmatprep.subr.mxu0 0.0
        %1177 = vmatpush1.msra.mxu0 0.0
        %1178 = vmatprep.subr.mxu0 0.0
        %1179 = vmatpush1.msra.mxu0 0.0
        %1180 = vmatprep.subr.mxu0 0.0
        %1181 = vmatpush1.msra.mxu0 0.0
        %1182 = vmatprep.subr.mxu0 0.0
        %1183 = vmatpush1.msra.mxu0 0.0
        %1184 = vmatprep.subr.mxu0 0.0
        %1185 = vmatpush1.msra.mxu0 0.0
        %1186 = vmatprep.subr.mxu0 0.0
        %1187 = vmatpush1.msra.mxu0 0.0
        %1188 = vmatprep.subr.mxu0 0.0
        %1189 = vmatpush1.msra.mxu0 0.0
        %1190 = vmatprep.subr.mxu0 0.0
        %1191 = vmatpush1.msra.mxu0 0.0
        %1192 = vmatprep.subr.mxu0 0.0
        %1193 = vmatpush1.msra.mxu0 0.0
        %1194 = vmatprep.subr.mxu0 0.0
        %1195 = vmatpush1.msra.mxu0 0.0
        %1196 = vmatprep.mubr.f32.mxu0 0.0
        %1197 = vmatmul.mubr.f32.gmra.mrb[0].mxu0 %v1131
        %v1198 = vpop.f32.mrb[0].mxu0
        %v1199 = vadd.f32 0.0, %v1198
        %v1200 = vpop.f32.mrb[0].mxu0
        %1201 = vdwg.mxu0
        %v1202 = vsel %vm1123, %v1199, 1.0
        %v1203 = vrcp.pop %v1202
        %v1204 = vmul.f32 %v1131, %v1203
        %v1205 = vsel %vm1123, %v1204, 0.0
        %1206 = vst [vmem:[%s229] sm:$0x1] %v1205
        %s1207 = sand.u32 %s103, 1
        %s1208 = scalar_lea.sflag [#allocation4], %s1207
        %s1209 = sand.u32 %s103, 1
        %s1210 = scalar_lea.vmem [#allocation5], %s1209
        // Predicated region
        $region37: #{tpu_custom_call.1} parent=31 // pred_check
          %p1211 = pneg %p113
        $region38: #{tpu_custom_call.1} parent=31 // pred_check_branch
          %1213 = sbr.rel (%p1211) target = $region40
        $region39: #{tpu_custom_call.1} parent=31 // pred_region
          %s1215 = ssub.s32 16, 16
          %1216 = vsyncadd %s1208, %s1215
          %s1217 = smul.addr %s20, 16
          %s1218 = scalar_lea.hbm %s3, %s1217
          %s1220 = sshll.u32 %s1210, 4
          %s1221 = int_to_ptr.vmem [resolvable:$true] %s1220
          %1223 = dma.vmem_to_hbm [thread:$0]  %s1221, 16, %s1218, %s1208
        $region40: #{tpu_custom_call.1} parent=31 // pred_fallthru
          _
      $region32: #{tpu_custom_call.1} parent=5 // pred_fallthru
        _
      %p1224 = scmp.le.s32.totalorder 2, %s15
      // Predicated region
      $region41: #{tpu_custom_call.1} parent=5 // pred_check
        %p1225 = pneg %p1224
      $region42: #{tpu_custom_call.1} parent=5 // pred_check_branch
        %1227 = sbr.rel (%p1225) target = $region44
      $region43: #{tpu_custom_call.1} parent=5 // pred_region
        %s1228 = ssub.s32 %s15, 2
        // Predicated region
        $region45: #{tpu_custom_call.1} parent=43 // pred_check
          %p1229 = pneg %p119
        $region46: #{tpu_custom_call.1} parent=43 // pred_check_branch
          %1231 = sbr.rel (%p1229) target = $region48
        $region47: #{tpu_custom_call.1} parent=43 // pred_region
          %s1232 = sand.u32 %s104, 1
          %s1233 = scalar_lea.sflag [#allocation4], %s1232
          %s1234 = sand.u32 %s104, 1
          %s1235 = scalar_lea.vmem [#allocation5], %s1234
          %1236 = dma.done %s1233, 16
        $region48: #{tpu_custom_call.1} parent=43 // pred_fallthru
          _
      $region44: #{tpu_custom_call.1} parent=5 // pred_fallthru
        _
    $region6: #{tpu_custom_call.1} parent=1 // loop_footer
      %s19 = sadd.s32 1, %s15
    $region7: #{tpu_custom_call.1} parent=1 // loop_footer_branch
      %14 = sbr.rel target = $region3
    $region8: #{tpu_custom_call.1} parent=1 // loop_exit
      _
    %1237 = vsyncpa [#allocation3], 1
    %s1238 = scalar_lea.sflag [#allocation3], 1
    %1239 = vsyncpa %s1238, 1
    %1240 = vsyncpa [#allocation4], 1
    %s1241 = scalar_lea.sflag [#allocation4], 1
    %1242 = vsyncpa %s1241, 1

</llo_original>
